<compile_context>
chip_gen: v6e
topology: v6e:2x2x1
jax: 0.10.0
libtpu: 0.0.40
codegen_flags: <defaults>
</compile_context>

<pallas_src>
import functools

import jax
import jax.numpy as jnp
from jax.experimental import pallas as pl
from jax.experimental.pallas import tpu as pltpu


def _cat_integration_kernel(x_ref, sb_ref, w_ref, ind_ref, o_ref):
    # x_ref  : (C_x, Td*HW)   compute dtype (bf16 by default) — Td d-slabs of x
    # sb_ref : (C_out, Td)    f32 — per-slab (Ws @ sensor + bias) columns
    # w_ref  : (C_out, C_x)   compute dtype — x-half of the 1x1x1 conv weight
    # ind_ref: (Td, Td*HW)    f32 — slab indicator, ind[t, l] = (l // HW == t)
    # o_ref  : (C_out, Td*HW) output dtype
    acc = jnp.dot(w_ref[...], x_ref[...], preferred_element_type=jnp.float32)
    # Per-slab sensor+bias column broadcast across its HW lanes via a tiny
    # (C_out, Td) x (Td, Td*HW) matmul -> one full-tile, lane-dense epilogue.
    acc = acc + jnp.dot(sb_ref[...], ind_ref[...],
                        preferred_element_type=jnp.float32)
    o_ref[...] = acc.astype(o_ref.dtype)


def _pick_td(n, d, hw, c_in, c_out, in_itemsize, out_itemsize):
    """How many whole (H*W) d-slabs to fuse per grid step."""
    budget = 16 * 1024 * 1024       # double-buffered in+out bytes per step
    max_lanes = 8192                # keep the epilogue within a handful of vregs
    min_steps = min(4, n * d)       # keep enough steps to pipeline / shard cores
    # BlockSpec legality: last block dim must be a multiple of 128 or == full dim.
    cands = [c for c in range(1, d + 1)
             if d % c == 0 and ((c * hw) % 128 == 0 or c == d)]
    best = cands[0]
    for c in cands:                 # increasing -> keep the largest that fits
        tl = c * hw
        step_bytes = 2 * tl * (c_in * in_itemsize + c_out * out_itemsize)
        if (step_bytes <= budget and tl <= max_lanes
                and n * (d // c) >= min_steps):
            best = c
    return best


def _vmem_estimate(tl, td, c_in, c_out, in_itemsize, out_itemsize):
    x_buf = 2 * c_in * tl * in_itemsize       # double-buffered x block
    o_buf = 2 * c_out * tl * out_itemsize     # double-buffered out block
    sb_buf = 2 * c_out * td * 4
    w_buf = 2 * c_out * c_in * in_itemsize
    ind_buf = 2 * td * tl * 4
    return x_buf + o_buf + sb_buf + w_buf + ind_buf


def cat_integration(x, sensor_data, weight, bias, *, c_x, c_s,
                    compute_dtype=jnp.bfloat16):
    """x: (N, C_x, D, H, W); sensor_data: (N, C_s, D);
    weight: (C_out, C_x+C_s, 1, 1, 1); bias: (C_out,).
    Returns (N, C_out, D, H, W) in x.dtype."""
    N, Cx, D, H, W = x.shape
    assert Cx == c_x and sensor_data.shape == (N, c_s, D)
    C_out = weight.shape[0]
    HW = H * W
    L = D * HW
    out_dtype = x.dtype
    cdt = jnp.dtype(compute_dtype)
    odt = jnp.dtype(out_dtype)

    # Split the 1x1x1 conv weight across the (virtual) concat boundary.
    w2d = weight.reshape(C_out, c_x + c_s)
    wx = w2d[:, :c_x].astype(cdt)                        # (C_out, C_x)  MXU operand
    ws = w2d[:, c_x:]                                    # (C_out, C_s)

    # Fold sensor contribution + bias into a per-(n, d) additive column (f32).
    sb = (jnp.einsum('os,nsd->nod', ws.astype(jnp.float32),
                     sensor_data.astype(jnp.float32),
                     precision=jax.lax.Precision.HIGHEST)
          + bias.astype(jnp.float32)[None, :, None])     # (N, C_out, D)

    td = _pick_td(N, D, HW, c_x, C_out, cdt.itemsize, odt.itemsize)
    tl = td * HW
    dt = D // td

    # Per-step (C_out, Td) sb block with a layout-legal BlockSpec.
    sb_t = sb.reshape(N, C_out, dt, td).transpose(0, 2, 1, 3)   # (N, dt, C_out, Td)

    # Constant slab-indicator matrix: ind[t, l] = 1.0 iff l // HW == t.
    # Its block index never changes, so the pipeliner DMAs it exactly once.
    lane = jax.lax.broadcasted_iota(jnp.int32, (td, tl), 1)
    row = jax.lax.broadcasted_iota(jnp.int32, (td, tl), 0)
    ind = ((lane // HW) == row).astype(jnp.float32)             # (Td, Td*HW)

    # Free reshape (contiguous trailing dims): NCDHW -> (N, C_x, D*H*W), then
    # cast to the compute dtype (no-op if x is already bf16 upstream).
    x3 = x.reshape(N, c_x, L).astype(cdt)

    cost = pl.CostEstimate(
        flops=2 * N * C_out * (c_x + td) * L,
        transcendentals=0,
        bytes_accessed=(N * c_x * L * cdt.itemsize
                        + N * C_out * L * odt.itemsize
                        + N * C_out * D * 4))

    cp_kwargs = dict(dimension_semantics=("parallel", "parallel"))
    vmem_need = _vmem_estimate(tl, td, c_x, C_out, cdt.itemsize, odt.itemsize)
    if vmem_need > 30 * 1024 * 1024:        # above the 32 MiB scoped default
        cp_kwargs["vmem_limit_bytes"] = min(48 * 1024 * 1024,
                                            int(vmem_need * 1.25))

    out = pl.pallas_call(
        _cat_integration_kernel,
        out_shape=jax.ShapeDtypeStruct((N, C_out, L), out_dtype),
        grid_spec=pltpu.PrefetchScalarGridSpec(
            num_scalar_prefetch=0,
            grid=(N, dt),
            in_specs=[
                pl.BlockSpec((None, c_x, tl), lambda n, j: (n, 0, j)),
                pl.BlockSpec((None, None, C_out, td), lambda n, j: (n, j, 0, 0)),
                pl.BlockSpec((C_out, c_x), lambda n, j: (0, 0)),
                pl.BlockSpec((td, tl), lambda n, j: (0, 0)),
            ],
            out_specs=pl.BlockSpec((None, C_out, tl), lambda n, j: (n, 0, j)),
        ),
        compiler_params=pltpu.CompilerParams(**cp_kwargs),
        cost_estimate=cost,
    )(x3, sb_t, wx, ind)

    # Free reshape back to NCDHW (no transpose anywhere).
    return out.reshape(N, C_out, D, H, W)


def _reference(x, sensor_data, weight, bias):
    """Pure-JAX f32 reference reproducing the PyTorch forward exactly."""
    N, Cx, D, H, W = x.shape
    Cs = sensor_data.shape[1]
    s_exp = jnp.broadcast_to(sensor_data[:, :, :, None, None], (N, Cs, D, H, W))
    cat = jnp.concatenate([x, s_exp], axis=1)                     # (N, 128, D, H, W)
    w2d = weight.reshape(weight.shape[0], Cx + Cs)                # (C_out, 128)
    out = jnp.einsum('ncdhw,oc->nodhw', cat, w2d,
                     precision=jax.lax.Precision.HIGHEST)
    return out + bias[None, :, None, None, None]


if __name__ == "__main__":
    key = jax.random.PRNGKey(0)
    k1, k2, k3, k4 = jax.random.split(key, 4)

    N, D, H, W = 2, 8, 16, 16             # HW = 256 -> lane-dense blocks
    C_x, C_s, C_out = 96, 32, 64          # C_x + C_s = 128 (Conv3d in-channels)

    x = jax.random.normal(k1, (N, C_x, D, H, W), dtype=jnp.float32)
    sensor = jax.random.normal(k2, (N, C_s, D), dtype=jnp.float32)

    # Deterministic synthetic conv parameters (Conv3d(128, 64, k=1)).
    weight = (jax.random.normal(k3, (C_out, 128, 1, 1, 1), dtype=jnp.float32)
              * (1.0 / jnp.sqrt(128.0)))
    bias = jax.random.normal(k4, (C_out,), dtype=jnp.float32) * 0.1

    out = cat_integration(x, sensor, weight, bias, c_x=C_x, c_s=C_s)
    out = jax.block_until_ready(out)

    ref = _reference(x, sensor, weight, bias)
    assert out.shape == (N, C_out, D, H, W)
    # bf16 MXU operands (f32 accumulation) vs f32 reference -> ~1e-2 tolerance.
    assert jnp.allclose(out, ref, atol=2e-2, rtol=2e-2), \
        float(jnp.max(jnp.abs(out - ref)))
    print("KERNEL_OK")
</pallas_src>

<mosaic_0001>
module attributes {stable_mosaic.version = 11 : i64} {
  func.func @_cat_integration_kernel(%arg0: i32, %arg1: i32, %arg2: memref<1x96x1024xbf16, #tpu.memory_space<vmem>>, %arg3: memref<1x1x64x4xf32, #tpu.memory_space<vmem>>, %arg4: memref<64x96xbf16, #tpu.memory_space<vmem>>, %arg5: memref<4x1024xf32, #tpu.memory_space<vmem>>, %arg6: memref<1x64x1024xf32, #tpu.memory_space<vmem>>) attributes {dimension_semantics = [#tpu.dimension_semantics<parallel>, #tpu.dimension_semantics<parallel>], iteration_bounds = array<i64: 2, 2>, scalar_prefetch = 0 : i64, scratch_operands = 0 : i64, tpu.core_type = #tpu.core_type<tc>, window_params = [{transform_indices = @transform_0, window_bounds = array<i64: 1, 96, 1024>}, {transform_indices = @transform_1, window_bounds = array<i64: 1, 1, 64, 4>}, {pipeline_mode = #tpu.pipeline_mode<synchronous>, transform_indices = @transform_2, window_bounds = array<i64: 64, 96>}, {pipeline_mode = #tpu.pipeline_mode<synchronous>, transform_indices = @transform_3, window_bounds = array<i64: 4, 1024>}, {transform_indices = @transform_4, window_bounds = array<i64: 1, 64, 1024>}]} {
    %c0 = arith.constant 0 : index
    %c0_0 = arith.constant 0 : index
    %0 = vector.load %arg4[%c0, %c0_0] : memref<64x96xbf16, #tpu.memory_space<vmem>>, vector<64x96xbf16>
    %c0_1 = arith.constant 0 : index
    %c0_2 = arith.constant 0 : index
    %c0_3 = arith.constant 0 : index
    %1 = vector.load %arg2[%c0_1, %c0_2, %c0_3] : memref<1x96x1024xbf16, #tpu.memory_space<vmem>>, vector<1x96x1024xbf16>
    %2 = vector.shape_cast %1 : vector<1x96x1024xbf16> to vector<96x1024xbf16>
    %cst = arith.constant dense<0.000000e+00> : vector<64x1024xf32>
    %3 = tpu.matmul %0, %2, %cst {dimension_numbers = #tpu.dot_dimension_numbers<[1], [0], [0], [1], [0, 0, 1, 1], [], []>} : vector<64x96xbf16>, vector<96x1024xbf16>, vector<64x1024xf32> -> vector<64x1024xf32>
    %c0_4 = arith.constant 0 : index
    %c0_5 = arith.constant 0 : index
    %c0_6 = arith.constant 0 : index
    %c0_7 = arith.constant 0 : index
    %4 = vector.load %arg3[%c0_4, %c0_5, %c0_6, %c0_7] : memref<1x1x64x4xf32, #tpu.memory_space<vmem>>, vector<1x1x64x4xf32>
    %5 = vector.shape_cast %4 : vector<1x1x64x4xf32> to vector<64x4xf32>
    %c0_8 = arith.constant 0 : index
    %c0_9 = arith.constant 0 : index
    %6 = vector.load %arg5[%c0_8, %c0_9] : memref<4x1024xf32, #tpu.memory_space<vmem>>, vector<4x1024xf32>
    %cst_10 = arith.constant dense<0.000000e+00> : vector<64x1024xf32>
    %7 = tpu.matmul %5, %6, %cst_10 {dimension_numbers = #tpu.dot_dimension_numbers<[1], [0], [0], [1], [0, 0, 1, 1], [], []>} : vector<64x4xf32>, vector<4x1024xf32>, vector<64x1024xf32> -> vector<64x1024xf32>
    %8 = arith.addf %3, %7 : vector<64x1024xf32>
    %c0_11 = arith.constant 0 : index
    %c0_12 = arith.constant 0 : index
    %c0_13 = arith.constant 0 : index
    %9 = vector.load %arg6[%c0_11, %c0_12, %c0_13] : memref<1x64x1024xf32, #tpu.memory_space<vmem>>, vector<1x64x1024xf32>
    %10 = vector.shape_cast %9 : vector<1x64x1024xf32> to vector<64x1024xf32>
    %11 = vector.shape_cast %8 : vector<64x1024xf32> to vector<1x64x1024xf32>
    tpu.vector_store %arg6[%c0_11, %c0_12, %c0_13], %11 {strides = array<i32>} : memref<1x64x1024xf32, #tpu.memory_space<vmem>>, vector<1x64x1024xf32>,
    return
  }
  func.func @transform_0(%arg0: i32, %arg1: i32) -> (i32, i32, i32) {
    %c0_i32 = arith.constant 0 : i32
    %c0_i32_0 = arith.constant 0 : i32
    return %arg0, %c0_i32, %arg1 : i32, i32, i32
  }
  func.func @transform_1(%arg0: i32, %arg1: i32) -> (i32, i32, i32, i32) {
    %c0_i32 = arith.constant 0 : i32
    %c0_i32_0 = arith.constant 0 : i32
    %c0_i32_1 = arith.constant 0 : i32
    return %arg0, %arg1, %c0_i32, %c0_i32_0 : i32, i32, i32, i32
  }
  func.func @transform_2(%arg0: i32, %arg1: i32) -> (i32, i32) {
    %c0_i32 = arith.constant 0 : i32
    %c0_i32_0 = arith.constant 0 : i32
    %c0_i32_1 = arith.constant 0 : i32
    return %c0_i32, %c0_i32_0 : i32, i32
  }
  func.func @transform_3(%arg0: i32, %arg1: i32) -> (i32, i32) {
    %c0_i32 = arith.constant 0 : i32
    %c0_i32_0 = arith.constant 0 : i32
    %c0_i32_1 = arith.constant 0 : i32
    return %c0_i32, %c0_i32_0 : i32, i32
  }
  func.func @transform_4(%arg0: i32, %arg1: i32) -> (i32, i32, i32) {
    %c0_i32 = arith.constant 0 : i32
    %c0_i32_0 = arith.constant 0 : i32
    return %arg0, %c0_i32, %arg1 : i32, i32, i32
  }
}

</mosaic_0001>

<llo_original>
// kernel: tpu_custom_call.1
$region0: #{tpu_custom_call.1}
  #allocation0 [shape = 'u32[]', space=smem, size = 0x4, offset = 0x4, fixed_abs, tag = 'smem constant byte address 0x4 - core index']
  #allocation1 [shape = 'u32[144,128]{1,0:T(1,128)}', space=vmem, size = 0x12000, scoped, tag = 'internal scratch']
  %s0 = inlined_call_operand.hbm [shape: bf16[2,96,2048], index: 0, kind: input, shape index: {}]
  %s1 = inlined_call_operand.vmem [shape: f32[2,2,64,4], index: 1, kind: input, shape index: {}]
  %s2 = inlined_call_operand.vmem [shape: bf16[64,96], index: 2, kind: input, shape index: {}]
  %s3 = inlined_call_operand.vmem [shape: f32[4,1024], index: 3, kind: input, shape index: {}]
  %s4 = inlined_call_operand.hbm [shape: f32[2,64,2048], index: 4, kind: output, shape index: {}]
  %s5 = sld [smem:[#allocation0]]
  $region53: #{tpu_custom_call.1} parent=0
    _
  %s7 = ssub.s32 1, %s5
  %s8 = scalar_select 0, %s7, %s5
  $region1: #{tpu_custom_call.1} parent=0
    #allocation2 [shape = 'u8[393216]{0}', space=vmem, size = 0x60000, scoped, tag = 'input window, operand 0']
    #allocation3 [shape = 's32[2]{0}', space=sflag, size = 0x8, scoped, tag = 'scoped memory for tpu_custom_call.1']
    #allocation4 [shape = 's32[2]{0}', space=sflag, size = 0x8, scoped, tag = 'scoped memory for tpu_custom_call.1']
    #allocation5 [shape = 'u8[524288]{0}', space=vmem, size = 0x80000, scoped, tag = 'output window, operand 0']
    %9 = vsyncpa [#allocation3], 0
    %s10 = scalar_lea.sflag [#allocation3], 1
    %11 = vsyncpa %s10, 0
    %12 = vsyncpa [#allocation4], 0
    %s13 = scalar_lea.sflag [#allocation4], 1
    %14 = vsyncpa %s13, 0
    loop: start=0, step=1, limit=6
    $region2: #{tpu_custom_call.1} parent=1 // loop_pre_header
      _
    $region3: #{tpu_custom_call.1} parent=1 // loop_header
      %s16 = sphi 0, %s20
      %p17 = scmp.ge.s32.totalorder %s16, 6
      %s23 = sphi 0, %s35
      %s24 = sphi 0, %s31
      %s25 = sphi 0, %s23
      %s26 = sphi 0, %s24
      %s27 = sphi 0, %s25
      %s28 = sphi 0, %s26
      %s40 = sphi 0, %s42
      %s43 = sphi 0, %s40
      %s44 = sphi 0, %s43
      %s60 = sphi 0, %s44
      %s68 = sphi 0, %s70
      %s71 = sphi 0, %s68
      %s72 = sphi 0, %s71
      %s88 = sphi 0, %s72
      %s92 = sphi 0, %s92
      %s94 = sphi 0, %s92
      %s95 = sphi 0, %s94
      %s109 = sphi 0, %s95
      %s113 = sphi 0, %s113
      %s115 = sphi 0, %s113
      %s116 = sphi 0, %s115
      %s130 = sphi 0, %s116
      %s138 = sphi 0, %s140
      %s141 = sphi 0, %s138
      %s142 = sphi 0, %s141
      %s158 = sphi 0, %s142
    $region4: #{tpu_custom_call.1} parent=1 // loop_header_branch
      %19 = sbr.rel (%p17) target = $region8
    $region5: #{tpu_custom_call.1} parent=1 // loop_body
      %s21 = ssub.s32 %s16, 1
      %s22 = ssub.s32 %s16, 2
      %s29 = sadd.s32 1, %s24
      %p30 = scmp.ge.s32.totalorder %s29, 2
      %s31 = scalar_select %p30, 0, %s29
      %s32 = sadd.s32 1, %s23
      %s33 = scalar_select %p30, %s32, %s23
      %p34 = scmp.ge.s32.totalorder %s33, 2
      %s35 = scalar_select %p34, 0, %s33
      %s36 = ssub.s32 %s23, %s35
      %s37 = ssub.s32 %s24, %s31
      %s38 = sor.u32 %s36, %s37
      %p39 = scmp.eq.s32.totalorder %s38, 0
      %s41 = sadd.s32 %s40, 1
      %s42 = scalar_select %p39, %s40, %s41
      %p45 = pneg %p39
      %p46 = scmp.eq.s32.totalorder %s16, 3
      %p47 = por %p45, %p46
      %p48 = scmp.ne.s32.totalorder %s40, %s43
      %p49 = scmp.eq.s32.totalorder %s16, 0
      %p50 = por %p48, %p49
      %p51 = scmp.ne.s32.totalorder %s40, %s43
      %p52 = scmp.eq.s32.totalorder %s21, 3
      %p53 = por %p51, %p52
      %p54 = scmp.ne.s32.totalorder %s43, %s44
      %p55 = scmp.eq.s32.totalorder %s21, 0
      %p56 = por %p54, %p55
      %p57 = scmp.ne.s32.totalorder %s43, %s44
      %p58 = scmp.eq.s32.totalorder %s22, 3
      %p59 = por %p57, %p58
      %p61 = scmp.ne.s32.totalorder %s44, %s60
      %p62 = scmp.eq.s32.totalorder %s22, 0
      %p63 = por %p61, %p62
      %s64 = ssub.s32 %s23, %s35
      %s65 = ssub.s32 %s24, %s31
      %s66 = sor.u32 %s64, %s65
      %p67 = scmp.eq.s32.totalorder %s66, 0
      %s69 = sadd.s32 %s68, 1
      %s70 = scalar_select %p67, %s68, %s69
      %p73 = pneg %p67
      %p74 = scmp.eq.s32.totalorder %s16, 3
      %p75 = por %p73, %p74
      %p76 = scmp.ne.s32.totalorder %s68, %s71
      %p77 = scmp.eq.s32.totalorder %s16, 0
      %p78 = por %p76, %p77
      %p79 = scmp.ne.s32.totalorder %s68, %s71
      %p80 = scmp.eq.s32.totalorder %s21, 3
      %p81 = por %p79, %p80
      %p82 = scmp.ne.s32.totalorder %s71, %s72
      %p83 = scmp.eq.s32.totalorder %s21, 0
      %p84 = por %p82, %p83
      %p85 = scmp.ne.s32.totalorder %s71, %s72
      %p86 = scmp.eq.s32.totalorder %s22, 3
      %p87 = por %p85, %p86
      %p89 = scmp.ne.s32.totalorder %s72, %s88
      %p90 = scmp.eq.s32.totalorder %s22, 0
      %p91 = por %p89, %p90
      %s93 = sadd.s32 %s92, 1
      %p96 = scmp.eq.s32.totalorder %s16, 3
      %p97 = scmp.ne.s32.totalorder %s92, %s94
      %p98 = scmp.eq.s32.totalorder %s16, 0
      %p99 = por %p97, %p98
      %p100 = scmp.ne.s32.totalorder %s92, %s94
      %p101 = scmp.eq.s32.totalorder %s21, 3
      %p102 = por %p100, %p101
      %p103 = scmp.ne.s32.totalorder %s94, %s95
      %p104 = scmp.eq.s32.totalorder %s21, 0
      %p105 = por %p103, %p104
      %p106 = scmp.ne.s32.totalorder %s94, %s95
      %p107 = scmp.eq.s32.totalorder %s22, 3
      %p108 = por %p106, %p107
      %p110 = scmp.ne.s32.totalorder %s95, %s109
      %p111 = scmp.eq.s32.totalorder %s22, 0
      %p112 = por %p110, %p111
      %s114 = sadd.s32 %s113, 1
      %p117 = scmp.eq.s32.totalorder %s16, 3
      %p118 = scmp.ne.s32.totalorder %s113, %s115
      %p119 = scmp.eq.s32.totalorder %s16, 0
      %p120 = por %p118, %p119
      %p121 = scmp.ne.s32.totalorder %s113, %s115
      %p122 = scmp.eq.s32.totalorder %s21, 3
      %p123 = por %p121, %p122
      %p124 = scmp.ne.s32.totalorder %s115, %s116
      %p125 = scmp.eq.s32.totalorder %s21, 0
      %p126 = por %p124, %p125
      %p127 = scmp.ne.s32.totalorder %s115, %s116
      %p128 = scmp.eq.s32.totalorder %s22, 3
      %p129 = por %p127, %p128
      %p131 = scmp.ne.s32.totalorder %s116, %s130
      %p132 = scmp.eq.s32.totalorder %s22, 0
      %p133 = por %p131, %p132
      %s134 = ssub.s32 %s23, %s35
      %s135 = ssub.s32 %s24, %s31
      %s136 = sor.u32 %s134, %s135
      %p137 = scmp.eq.s32.totalorder %s136, 0
      %s139 = sadd.s32 %s138, 1
      %s140 = scalar_select %p137, %s138, %s139
      %p143 = pneg %p137
      %p144 = scmp.eq.s32.totalorder %s16, 3
      %p145 = por %p143, %p144
      %p146 = scmp.ne.s32.totalorder %s138, %s141
      %p147 = scmp.eq.s32.totalorder %s16, 0
      %p148 = por %p146, %p147
      %p149 = scmp.ne.s32.totalorder %s138, %s141
      %p150 = scmp.eq.s32.totalorder %s21, 3
      %p151 = por %p149, %p150
      %p152 = scmp.ne.s32.totalorder %s141, %s142
      %p153 = scmp.eq.s32.totalorder %s21, 0
      %p154 = por %p152, %p153
      %p155 = scmp.ne.s32.totalorder %s141, %s142
      %p156 = scmp.eq.s32.totalorder %s22, 3
      %p157 = por %p155, %p156
      %p159 = scmp.ne.s32.totalorder %s142, %s158
      %p160 = scmp.eq.s32.totalorder %s22, 0
      %p161 = por %p159, %p160
      %p162 = scmp.le.s32.totalorder 1, %s16
      %p163 = scmp.lt.s32.totalorder %s16, 5
      %p164 = pnand %p162, %p163
      %p165 = pneg %p164
      // Predicated region
      $region9: #{tpu_custom_call.1} parent=5 // pred_check
        _
      $region10: #{tpu_custom_call.1} parent=5 // pred_check_branch
        %167 = sbr.rel (%p164) target = $region12
      $region11: #{tpu_custom_call.1} parent=5 // pred_region
        %s168 = ssub.s32 %s16, 1
        // Predicated region
        $region13: #{tpu_custom_call.1} parent=11 // pred_check
          %p169 = pneg %p105
        $region14: #{tpu_custom_call.1} parent=11 // pred_check_branch
          %171 = sbr.rel (%p169) target = $region16
        $region15: #{tpu_custom_call.1} parent=11 // pred_region
          _
        $region16: #{tpu_custom_call.1} parent=11 // pred_fallthru
          _
        // Predicated region
        $region17: #{tpu_custom_call.1} parent=11 // pred_check
          %p172 = pneg %p126
        $region18: #{tpu_custom_call.1} parent=11 // pred_check_branch
          %174 = sbr.rel (%p172) target = $region20
        $region19: #{tpu_custom_call.1} parent=11 // pred_region
          _
        $region20: #{tpu_custom_call.1} parent=11 // pred_fallthru
          _
      $region12: #{tpu_custom_call.1} parent=5 // pred_fallthru
        _
      %p175 = scmp.lt.s32.totalorder %s16, 4
      // Predicated region
      $region21: #{tpu_custom_call.1} parent=5 // pred_check
        %p176 = pneg %p175
      $region22: #{tpu_custom_call.1} parent=5 // pred_check_branch
        %178 = sbr.rel (%p176) target = $region24
      $region23: #{tpu_custom_call.1} parent=5 // pred_region
        // Predicated region
        $region25: #{tpu_custom_call.1} parent=23 // pred_check
          %p179 = pneg %p50
        $region26: #{tpu_custom_call.1} parent=23 // pred_check_branch
          %181 = sbr.rel (%p179) target = $region28
        $region27: #{tpu_custom_call.1} parent=23 // pred_region
          %s182 = sand.u32 %s40, 1
          %s183 = scalar_lea.sflag [#allocation3], %s182
          %s184 = sand.u32 %s40, 1
          %s185 = smul.addr %s184, 384
          %s186 = scalar_lea.vmem [#allocation2], %s185
          %s187 = smul.u32 8, %s24
          %s189 = ssub.s32 6144, 6144
          %190 = vsyncadd %s183, %s189
          %s191 = smul.addr %s23, 192
          %s192 = sadd.s32 %s187, %s191
          %s193 = smul.addr %s192, 64
          %s194 = scalar_lea.hbm %s0, %s193
          %s195 = sshll.u32 %s186, 4
          %s196 = int_to_ptr.vmem [resolvable:$true] %s195
          %201 = dma.hbm_to_vmem [thread:$0]  %s194, 6144, %s196, %s183, 1024, 512, 32
        $region28: #{tpu_custom_call.1} parent=23 // pred_fallthru
          _
        // Predicated region
        $region29: #{tpu_custom_call.1} parent=23 // pred_check
          %p202 = pneg %p78
        $region30: #{tpu_custom_call.1} parent=23 // pred_check_branch
          %204 = sbr.rel (%p202) target = $region32
        $region31: #{tpu_custom_call.1} parent=23 // pred_region
          %p205 = scmp.lt.s32.totalorder %s23, 1
          %s206 = scalar_select %p205, %s23, 1
          %p207 = scmp.lt.s32.totalorder %s24, 1
          %s208 = scalar_select %p207, %s24, 1
          %s209 = smul.addr %s208, 8
          %s210 = smul.addr %s206, 16
          %s211 = sadd.s32 %s209, %s210
          %s212 = smul.addr %s211, 8
          %s213 = scalar_lea.vmem %s1, %s212
        $region32: #{tpu_custom_call.1} parent=23 // pred_fallthru
          _
      $region24: #{tpu_custom_call.1} parent=5 // pred_fallthru
        _
      %p214 = scmp.le.s32.totalorder 1, %s16
      %p215 = scmp.lt.s32.totalorder %s16, 5
      %p216 = pnand %p214, %p215
      %p217 = pneg %p216
      // Predicated region
      $region33: #{tpu_custom_call.1} parent=5 // pred_check
        _
      $region34: #{tpu_custom_call.1} parent=5 // pred_check_branch
        %219 = sbr.rel (%p216) target = $region36
      $region35: #{tpu_custom_call.1} parent=5 // pred_region
        %s220 = ssub.s32 %s16, 1
        %s221 = sand.u32 %s43, 1
        %s222 = scalar_lea.sflag [#allocation3], %s221
        %s223 = sand.u32 %s43, 1
        %s224 = smul.addr %s223, 384
        %s225 = scalar_lea.vmem [#allocation2], %s224
        // Predicated region
        $region37: #{tpu_custom_call.1} parent=35 // pred_check
          %p226 = pneg %p56
        $region38: #{tpu_custom_call.1} parent=35 // pred_check_branch
          %228 = sbr.rel (%p226) target = $region40
        $region39: #{tpu_custom_call.1} parent=35 // pred_region
          %229 = dma.done %s222, 6144
        $region40: #{tpu_custom_call.1} parent=35 // pred_fallthru
          _
        %s230 = sand.u32 %s43, 1
        %s231 = scalar_lea.sflag [#allocation3], %s230
        %s232 = sand.u32 %s43, 1
        %s233 = smul.addr %s232, 384
        %s234 = scalar_lea.vmem [#allocation2], %s233
        %p235 = pneg %p56
        %p236 = pneg %p53
        %p237 = scmp.lt.s32.totalorder %s25, 1
        %s238 = scalar_select %p237, %s25, 1
        %p239 = scmp.lt.s32.totalorder %s26, 1
        %s240 = scalar_select %p239, %s26, 1
        %s241 = smul.addr %s240, 8
        %s242 = smul.addr %s238, 16
        %s243 = sadd.s32 %s241, %s242
        %s244 = smul.addr %s243, 8
        %s245 = scalar_lea.vmem %s1, %s244
        %p246 = pneg %p84
        %p247 = pneg %p81
        %p248 = pneg %p105
        %p249 = pneg %p102
        %p250 = pneg %p126
        %p251 = pneg %p123
        %p252 = pneg %p154
        %p253 = pneg %p151
        %s254 = sand.u32 %s141, 1
        %s255 = scalar_lea.sflag [#allocation4], %s254
        %s256 = sand.u32 %s141, 1
        %s257 = smul.addr %s256, 512
        %s258 = scalar_lea.vmem [#allocation5], %s257
        %s259 = smul.u32 8, %s26
        %p260 = scmp.lt.s32.totalorder %s25, 1
        %s261 = scalar_select %p260, %s25, 1
        %p262 = scmp.lt.s32.totalorder %s26, 1
        %s263 = scalar_select %p262, %s26, 1
        %s264 = smul.addr %s263, 8
        %s265 = smul.addr %s261, 16
        %s266 = sadd.s32 %s264, %s265
        %s267 = smul.addr %s266, 8
        %s268 = scalar_lea.vmem %s1, %s267
        %s269 = smul.u32 8, %s26
        %v271 = vld [vmem:[%s2] sm:$0xf]
        %v272 = vld [vmem:[%s2 + $0x4] sm:$0xf]
        %v273 = vld [vmem:[%s2 + $0x8] sm:$0xf]
        %v274 = vld [vmem:[%s2 + $0xc] sm:$0xf]
        %v275 = vld [vmem:[%s2 + $0x10] sm:$0xf]
        %v276 = vld [vmem:[%s2 + $0x14] sm:$0xf]
        %v277 = vld [vmem:[%s2 + $0x18] sm:$0xf]
        %v278 = vld [vmem:[%s2 + $0x1c] sm:$0xf]
        %v279 = vld [vmem:[%s225] sm:$0xff]
        %v280 = vld [vmem:[%s225 + $0x8] sm:$0xff]
        %v281 = vld [vmem:[%s225 + $0x10] sm:$0xff]
        %v282 = vld [vmem:[%s225 + $0x18] sm:$0xff]
        %v283 = vld [vmem:[%s225 + $0x20] sm:$0xff]
        %v284 = vld [vmem:[%s225 + $0x28] sm:$0xff]
        %v285 = vld [vmem:[%s225 + $0x30] sm:$0xff]
        %v286 = vld [vmem:[%s225 + $0x38] sm:$0xff]
        %v287 = vld [vmem:[%s225 + $0x40] sm:$0xff]
        %v288 = vld [vmem:[%s225 + $0x48] sm:$0xff]
        %v289 = vld [vmem:[%s225 + $0x50] sm:$0xff]
        %v290 = vld [vmem:[%s225 + $0x58] sm:$0xff]
        %v291 = vld [vmem:[%s225 + $0x60] sm:$0xff]
        %v292 = vld [vmem:[%s225 + $0x68] sm:$0xff]
        %v293 = vld [vmem:[%s225 + $0x70] sm:$0xff]
        %v294 = vld [vmem:[%s225 + $0x78] sm:$0xff]
        %v295 = vld [vmem:[%s225 + $0x80] sm:$0xff]
        %v296 = vld [vmem:[%s225 + $0x88] sm:$0xff]
        %v297 = vld [vmem:[%s225 + $0x90] sm:$0xff]
        %v298 = vld [vmem:[%s225 + $0x98] sm:$0xff]
        %v299 = vld [vmem:[%s225 + $0xa0] sm:$0xff]
        %v300 = vld [vmem:[%s225 + $0xa8] sm:$0xff]
        %v301 = vld [vmem:[%s225 + $0xb0] sm:$0xff]
        %v302 = vld [vmem:[%s225 + $0xb8] sm:$0xff]
        %v303 = vld [vmem:[%s225 + $0xc0] sm:$0xff]
        %v304 = vld [vmem:[%s225 + $0xc8] sm:$0xff]
        %v305 = vld [vmem:[%s225 + $0xd0] sm:$0xff]
        %v306 = vld [vmem:[%s225 + $0xd8] sm:$0xff]
        %v307 = vld [vmem:[%s225 + $0xe0] sm:$0xff]
        %v308 = vld [vmem:[%s225 + $0xe8] sm:$0xff]
        %v309 = vld [vmem:[%s225 + $0xf0] sm:$0xff]
        %v310 = vld [vmem:[%s225 + $0xf8] sm:$0xff]
        %v311 = vld [vmem:[%s225 + $0x100] sm:$0xff]
        %v312 = vld [vmem:[%s225 + $0x108] sm:$0xff]
        %v313 = vld [vmem:[%s225 + $0x110] sm:$0xff]
        %v314 = vld [vmem:[%s225 + $0x118] sm:$0xff]
        %v315 = vld [vmem:[%s225 + $0x120] sm:$0xff]
        %v316 = vld [vmem:[%s225 + $0x128] sm:$0xff]
        %v317 = vld [vmem:[%s225 + $0x130] sm:$0xff]
        %v318 = vld [vmem:[%s225 + $0x138] sm:$0xff]
        %v319 = vld [vmem:[%s225 + $0x140] sm:$0xff]
        %v320 = vld [vmem:[%s225 + $0x148] sm:$0xff]
        %v321 = vld [vmem:[%s225 + $0x150] sm:$0xff]
        %v322 = vld [vmem:[%s225 + $0x158] sm:$0xff]
        %v323 = vld [vmem:[%s225 + $0x160] sm:$0xff]
        %v324 = vld [vmem:[%s225 + $0x168] sm:$0xff]
        %v325 = vld [vmem:[%s225 + $0x170] sm:$0xff]
        %v326 = vld [vmem:[%s225 + $0x178] sm:$0xff]
        %v327 = vld [vmem:[%s268] sm:$0xff]
        %v328 = vld [vmem:[%s268 + $0x8] sm:$0xff]
        %v329 = vld [vmem:[%s268 + $0x10] sm:$0xff]
        %v330 = vld [vmem:[%s268 + $0x18] sm:$0xff]
        %v331 = vld [vmem:[%s268 + $0x20] sm:$0xff]
        %v332 = vld [vmem:[%s268 + $0x28] sm:$0xff]
        %v333 = vld [vmem:[%s268 + $0x30] sm:$0xff]
        %v334 = vld [vmem:[%s268 + $0x38] sm:$0xff]
        %v335 = vld [vmem:[%s3] sm:$0xff]
        %v336 = vld [vmem:[%s3 + $0x8] sm:$0xff]
        %v337 = vld [vmem:[%s3 + $0x10] sm:$0xff]
        %v338 = vld [vmem:[%s3 + $0x18] sm:$0xff]
        %v343 = vcombine.high %v335, %v335
        %v344 = vcombine.high %v336, %v336
        %v345 = vcombine.high %v337, %v337
        %v346 = vcombine.high %v338, %v338
        %vm347 = vcmask 31744
        %v349 = vsel %vm347, %v327, 0
        %v352 = vsel %vm347, %v328, 0
        %v355 = vsel %vm347, %v329, 0
        %v358 = vsel %vm347, %v330, 0
        %v361 = vsel %vm347, %v331, 0
        %v364 = vsel %vm347, %v332, 0
        %v367 = vsel %vm347, %v333, 0
        %v370 = vsel %vm347, %v334, 0
        %vm372 = vcmask 1043456
        %v373 = vsel %vm372, %v335, 0
        %v375 = vsel %vm372, %v343, 0
        %v377 = vsel %vm372, %v336, 0
        %v379 = vsel %vm372, %v344, 0
        %v381 = vsel %vm372, %v337, 0
        %v383 = vsel %vm372, %v345, 0
        %v385 = vsel %vm372, %v338, 0
        %v387 = vsel %vm372, %v346, 0
        %389 = vmatprep.subr.mxu0 0.0
        %390 = vmatpush1.msra.mxu0 0.0
        %391 = vmatprep.subr.mxu0 0.0
        %392 = vmatpush1.msra.mxu0 0.0
        %393 = vmatprep.subr.mxu0 0.0
        %394 = vmatpush1.msra.mxu0 0.0
        %395 = vmatprep.subr.mxu0 0.0
        %396 = vmatpush1.msra.mxu0 0.0
        %397 = vmatprep.subr.mxu0 0.0
        %398 = vmatpush1.msra.mxu0 0.0
        %399 = vmatprep.subr.mxu0 0.0
        %400 = vmatpush1.msra.mxu0 0.0
        %401 = vmatprep.subr.mxu0 0.0
        %402 = vmatpush1.msra.mxu0 0.0
        %403 = vmatprep.subr.mxu0 0.0
        %404 = vmatpush1.msra.mxu0 0.0
        %405 = vmatprep.subr.mxu0 0.0
        %406 = vmatpush1.msra.mxu0 0.0
        %407 = vmatprep.subr.mxu0 0.0
        %408 = vmatpush1.msra.mxu0 0.0
        %409 = vmatprep.subr.mxu0 0.0
        %410 = vmatpush1.msra.mxu0 0.0
        %411 = vmatprep.subr.mxu0 0.0
        %412 = vmatpush1.msra.mxu0 0.0
        %413 = vmatprep.subr.mxu0 0.0
        %414 = vmatpush1.msra.mxu0 0.0
        %415 = vmatprep.subr.mxu0 0.0
        %416 = vmatpush1.msra.mxu0 0.0
        %417 = vmatprep.subr.mxu0 0.0
        %418 = vmatpush1.msra.mxu0 0.0
        %419 = vmatprep.subr.mxu0 %v375
        %420 = vmatpush1.msra.mxu0 %v373
        %421 = vmatprep.subr.mxu0 0.0
        %422 = vmatpush2.msra.mxu0 0.0
        %423 = vmatprep.subr.mxu0 0.0
        %424 = vmatpush2.msra.mxu0 0.0
        %425 = vmatprep.subr.mxu0 0.0
        %426 = vmatpush2.msra.mxu0 0.0
        %427 = vmatprep.subr.mxu0 0.0
        %428 = vmatpush2.msra.mxu0 0.0
        %429 = vmatprep.subr.mxu0 0.0
        %430 = vmatpush2.msra.mxu0 0.0
        %431 = vmatprep.subr.mxu0 0.0
        %432 = vmatpush2.msra.mxu0 0.0
        %433 = vmatprep.subr.mxu0 0.0
        %434 = vmatpush2.msra.mxu0 0.0
        %435 = vmatprep.subr.mxu0 0.0
        %436 = vmatpush2.msra.mxu0 0.0
        %437 = vmatprep.subr.mxu0 0.0
        %438 = vmatpush2.msra.mxu0 0.0
        %439 = vmatprep.subr.mxu0 0.0
        %440 = vmatpush2.msra.mxu0 0.0
        %441 = vmatprep.subr.mxu0 0.0
        %442 = vmatpush2.msra.mxu0 0.0
        %443 = vmatprep.subr.mxu0 0.0
        %444 = vmatpush2.msra.mxu0 0.0
        %445 = vmatprep.subr.mxu0 0.0
        %446 = vmatpush2.msra.mxu0 0.0
        %447 = vmatprep.subr.mxu0 0.0
        %448 = vmatpush2.msra.mxu0 0.0
        %449 = vmatprep.subr.mxu0 0.0
        %450 = vmatpush2.msra.mxu0 0.0
        %451 = vmatprep.subr.mxu0 0.0
        %452 = vmatpush2.msra.mxu0 0.0
        %453 = vmatprep.mubr.f32.mxu0 0.0
        %454 = vmatmul.mubr.f32.gmra.mxu0 %v349
        %v455 = vpop.f32.mrf.mxu0
        %v456 = vadd.f32 0.0, %v455
        %v457 = vpop.f32.mrf.mxu0
        %v458 = vadd.f32 0.0, %v457
        %459 = vmatprep.mubr.f32.mxu0 0.0
        %460 = vmatmul.mubr.f32.gmra.mxu0 %v352
        %v461 = vpop.f32.mrf.mxu0
        %v462 = vadd.f32 0.0, %v461
        %v463 = vpop.f32.mrf.mxu0
        %v464 = vadd.f32 0.0, %v463
        %465 = vmatprep.mubr.f32.mxu0 0.0
        %466 = vmatmul.mubr.f32.gmra.mxu0 %v355
        %v467 = vpop.f32.mrf.mxu0
        %v468 = vadd.f32 0.0, %v467
        %v469 = vpop.f32.mrf.mxu0
        %v470 = vadd.f32 0.0, %v469
        %471 = vmatprep.mubr.f32.mxu0 0.0
        %472 = vmatmul.mubr.f32.gmra.mxu0 %v358
        %v473 = vpop.f32.mrf.mxu0
        %v474 = vadd.f32 0.0, %v473
        %v475 = vpop.f32.mrf.mxu0
        %v476 = vadd.f32 0.0, %v475
        %477 = vmatprep.mubr.f32.mxu0 0.0
        %478 = vmatmul.mubr.f32.gmra.mxu0 %v361
        %v479 = vpop.f32.mrf.mxu0
        %v480 = vadd.f32 0.0, %v479
        %v481 = vpop.f32.mrf.mxu0
        %v482 = vadd.f32 0.0, %v481
        %483 = vmatprep.mubr.f32.mxu0 0.0
        %484 = vmatmul.mubr.f32.gmra.mxu0 %v364
        %v485 = vpop.f32.mrf.mxu0
        %v486 = vadd.f32 0.0, %v485
        %v487 = vpop.f32.mrf.mxu0
        %v488 = vadd.f32 0.0, %v487
        %489 = vmatprep.mubr.f32.mxu0 0.0
        %490 = vmatmul.mubr.f32.gmra.mxu0 %v367
        %v491 = vpop.f32.mrf.mxu0
        %v492 = vadd.f32 0.0, %v491
        %v493 = vpop.f32.mrf.mxu0
        %v494 = vadd.f32 0.0, %v493
        %495 = vmatprep.mubr.f32.mxu0 0.0
        %496 = vmatmul.mubr.f32.gmra.mxu0 %v370
        %v497 = vpop.f32.mrf.mxu0
        %v498 = vadd.f32 0.0, %v497
        %v499 = vpop.f32.mrf.mxu0
        %v500 = vadd.f32 0.0, %v499
        %501 = vdwg.mxu0
        %502 = vmatprep.subr.mxu0 0.0
        %503 = vmatpush1.msra.mxu0 0.0
        %504 = vmatprep.subr.mxu0 0.0
        %505 = vmatpush1.msra.mxu0 0.0
        %506 = vmatprep.subr.mxu0 0.0
        %507 = vmatpush1.msra.mxu0 0.0
        %508 = vmatprep.subr.mxu0 0.0
        %509 = vmatpush1.msra.mxu0 0.0
        %510 = vmatprep.subr.mxu0 0.0
        %511 = vmatpush1.msra.mxu0 0.0
        %512 = vmatprep.subr.mxu0 0.0
        %513 = vmatpush1.msra.mxu0 0.0
        %514 = vmatprep.subr.mxu0 0.0
        %515 = vmatpush1.msra.mxu0 0.0
        %516 = vmatprep.subr.mxu0 0.0
        %517 = vmatpush1.msra.mxu0 0.0
        %518 = vmatprep.subr.mxu0 0.0
        %519 = vmatpush1.msra.mxu0 0.0
        %520 = vmatprep.subr.mxu0 0.0
        %521 = vmatpush1.msra.mxu0 0.0
        %522 = vmatprep.subr.mxu0 0.0
        %523 = vmatpush1.msra.mxu0 0.0
        %524 = vmatprep.subr.mxu0 0.0
        %525 = vmatpush1.msra.mxu0 0.0
        %526 = vmatprep.subr.mxu0 0.0
        %527 = vmatpush1.msra.mxu0 0.0
        %528 = vmatprep.subr.mxu0 0.0
        %529 = vmatpush1.msra.mxu0 0.0
        %530 = vmatprep.subr.mxu0 0.0
        %531 = vmatpush1.msra.mxu0 0.0
        %532 = vmatprep.subr.mxu0 %v379
        %533 = vmatpush1.msra.mxu0 %v377
        %534 = vmatprep.subr.mxu0 0.0
        %535 = vmatpush2.msra.mxu0 0.0
        %536 = vmatprep.subr.mxu0 0.0
        %537 = vmatpush2.msra.mxu0 0.0
        %538 = vmatprep.subr.mxu0 0.0
        %539 = vmatpush2.msra.mxu0 0.0
        %540 = vmatprep.subr.mxu0 0.0
        %541 = vmatpush2.msra.mxu0 0.0
        %542 = vmatprep.subr.mxu0 0.0
        %543 = vmatpush2.msra.mxu0 0.0
        %544 = vmatprep.subr.mxu0 0.0
        %545 = vmatpush2.msra.mxu0 0.0
        %546 = vmatprep.subr.mxu0 0.0
        %547 = vmatpush2.msra.mxu0 0.0
        %548 = vmatprep.subr.mxu0 0.0
        %549 = vmatpush2.msra.mxu0 0.0
        %550 = vmatprep.subr.mxu0 0.0
        %551 = vmatpush2.msra.mxu0 0.0
        %552 = vmatprep.subr.mxu0 0.0
        %553 = vmatpush2.msra.mxu0 0.0
        %554 = vmatprep.subr.mxu0 0.0
        %555 = vmatpush2.msra.mxu0 0.0
        %556 = vmatprep.subr.mxu0 0.0
        %557 = vmatpush2.msra.mxu0 0.0
        %558 = vmatprep.subr.mxu0 0.0
        %559 = vmatpush2.msra.mxu0 0.0
        %560 = vmatprep.subr.mxu0 0.0
        %561 = vmatpush2.msra.mxu0 0.0
        %562 = vmatprep.subr.mxu0 0.0
        %563 = vmatpush2.msra.mxu0 0.0
        %564 = vmatprep.subr.mxu0 0.0
        %565 = vmatpush2.msra.mxu0 0.0
        %566 = vmatprep.mubr.f32.mxu0 0.0
        %567 = vmatmul.mubr.f32.gmra.mxu0 %v349
        %v568 = vpop.f32.mrf.mxu0
        %v569 = vadd.f32 0.0, %v568
        %v570 = vpop.f32.mrf.mxu0
        %v571 = vadd.f32 0.0, %v570
        %572 = vmatprep.mubr.f32.mxu0 0.0
        %573 = vmatmul.mubr.f32.gmra.mxu0 %v352
        %v574 = vpop.f32.mrf.mxu0
        %v575 = vadd.f32 0.0, %v574
        %v576 = vpop.f32.mrf.mxu0
        %v577 = vadd.f32 0.0, %v576
        %578 = vmatprep.mubr.f32.mxu0 0.0
        %579 = vmatmul.mubr.f32.gmra.mxu0 %v355
        %v580 = vpop.f32.mrf.mxu0
        %v581 = vadd.f32 0.0, %v580
        %v582 = vpop.f32.mrf.mxu0
        %v583 = vadd.f32 0.0, %v582
        %584 = vmatprep.mubr.f32.mxu0 0.0
        %585 = vmatmul.mubr.f32.gmra.mxu0 %v358
        %v586 = vpop.f32.mrf.mxu0
        %v587 = vadd.f32 0.0, %v586
        %v588 = vpop.f32.mrf.mxu0
        %v589 = vadd.f32 0.0, %v588
        %590 = vmatprep.mubr.f32.mxu0 0.0
        %591 = vmatmul.mubr.f32.gmra.mxu0 %v361
        %v592 = vpop.f32.mrf.mxu0
        %v593 = vadd.f32 0.0, %v592
        %v594 = vpop.f32.mrf.mxu0
        %v595 = vadd.f32 0.0, %v594
        %596 = vmatprep.mubr.f32.mxu0 0.0
        %597 = vmatmul.mubr.f32.gmra.mxu0 %v364
        %v598 = vpop.f32.mrf.mxu0
        %v599 = vadd.f32 0.0, %v598
        %v600 = vpop.f32.mrf.mxu0
        %v601 = vadd.f32 0.0, %v600
        %602 = vmatprep.mubr.f32.mxu0 0.0
        %603 = vmatmul.mubr.f32.gmra.mxu0 %v367
        %v604 = vpop.f32.mrf.mxu0
        %v605 = vadd.f32 0.0, %v604
        %v606 = vpop.f32.mrf.mxu0
        %v607 = vadd.f32 0.0, %v606
        %608 = vmatprep.mubr.f32.mxu0 0.0
        %609 = vmatmul.mubr.f32.gmra.mxu0 %v370
        %v610 = vpop.f32.mrf.mxu0
        %v611 = vadd.f32 0.0, %v610
        %v612 = vpop.f32.mrf.mxu0
        %v613 = vadd.f32 0.0, %v612
        %614 = vdwg.mxu0
        %615 = vmatprep.subr.mxu0 0.0
        %616 = vmatpush1.msra.mxu0 0.0
        %617 = vmatprep.subr.mxu0 0.0
        %618 = vmatpush1.msra.mxu0 0.0
        %619 = vmatprep.subr.mxu0 0.0
        %620 = vmatpush1.msra.mxu0 0.0
        %621 = vmatprep.subr.mxu0 0.0
        %622 = vmatpush1.msra.mxu0 0.0
        %623 = vmatprep.subr.mxu0 0.0
        %624 = vmatpush1.msra.mxu0 0.0
        %625 = vmatprep.subr.mxu0 0.0
        %626 = vmatpush1.msra.mxu0 0.0
        %627 = vmatprep.subr.mxu0 0.0
        %628 = vmatpush1.msra.mxu0 0.0
        %629 = vmatprep.subr.mxu0 0.0
        %630 = vmatpush1.msra.mxu0 0.0
        %631 = vmatprep.subr.mxu0 0.0
        %632 = vmatpush1.msra.mxu0 0.0
        %633 = vmatprep.subr.mxu0 0.0
        %634 = vmatpush1.msra.mxu0 0.0
        %635 = vmatprep.subr.mxu0 0.0
        %636 = vmatpush1.msra.mxu0 0.0
        %637 = vmatprep.subr.mxu0 0.0
        %638 = vmatpush1.msra.mxu0 0.0
        %639 = vmatprep.subr.mxu0 0.0
        %640 = vmatpush1.msra.mxu0 0.0
        %641 = vmatprep.subr.mxu0 0.0
        %642 = vmatpush1.msra.mxu0 0.0
        %643 = vmatprep.subr.mxu0 0.0
        %644 = vmatpush1.msra.mxu0 0.0
        %645 = vmatprep.subr.mxu0 %v383
        %646 = vmatpush1.msra.mxu0 %v381
        %647 = vmatprep.subr.mxu0 0.0
        %648 = vmatpush2.msra.mxu0 0.0
        %649 = vmatprep.subr.mxu0 0.0
        %650 = vmatpush2.msra.mxu0 0.0
        %651 = vmatprep.subr.mxu0 0.0
        %652 = vmatpush2.msra.mxu0 0.0
        %653 = vmatprep.subr.mxu0 0.0
        %654 = vmatpush2.msra.mxu0 0.0
        %655 = vmatprep.subr.mxu0 0.0
        %656 = vmatpush2.msra.mxu0 0.0
        %657 = vmatprep.subr.mxu0 0.0
        %658 = vmatpush2.msra.mxu0 0.0
        %659 = vmatprep.subr.mxu0 0.0
        %660 = vmatpush2.msra.mxu0 0.0
        %661 = vmatprep.subr.mxu0 0.0
        %662 = vmatpush2.msra.mxu0 0.0
        %663 = vmatprep.subr.mxu0 0.0
        %664 = vmatpush2.msra.mxu0 0.0
        %665 = vmatprep.subr.mxu0 0.0
        %666 = vmatpush2.msra.mxu0 0.0
        %667 = vmatprep.subr.mxu0 0.0
        %668 = vmatpush2.msra.mxu0 0.0
        %669 = vmatprep.subr.mxu0 0.0
        %670 = vmatpush2.msra.mxu0 0.0
        %671 = vmatprep.subr.mxu0 0.0
        %672 = vmatpush2.msra.mxu0 0.0
        %673 = vmatprep.subr.mxu0 0.0
        %674 = vmatpush2.msra.mxu0 0.0
        %675 = vmatprep.subr.mxu0 0.0
        %676 = vmatpush2.msra.mxu0 0.0
        %677 = vmatprep.subr.mxu0 0.0
        %678 = vmatpush2.msra.mxu0 0.0
        %679 = vmatprep.mubr.f32.mxu0 0.0
        %680 = vmatmul.mubr.f32.gmra.mxu0 %v349
        %v681 = vpop.f32.mrf.mxu0
        %v682 = vadd.f32 0.0, %v681
        %v683 = vpop.f32.mrf.mxu0
        %v684 = vadd.f32 0.0, %v683
        %685 = vmatprep.mubr.f32.mxu0 0.0
        %686 = vmatmul.mubr.f32.gmra.mxu0 %v352
        %v687 = vpop.f32.mrf.mxu0
        %v688 = vadd.f32 0.0, %v687
        %v689 = vpop.f32.mrf.mxu0
        %v690 = vadd.f32 0.0, %v689
        %691 = vmatprep.mubr.f32.mxu0 0.0
        %692 = vmatmul.mubr.f32.gmra.mxu0 %v355
        %v693 = vpop.f32.mrf.mxu0
        %v694 = vadd.f32 0.0, %v693
        %v695 = vpop.f32.mrf.mxu0
        %v696 = vadd.f32 0.0, %v695
        %697 = vmatprep.mubr.f32.mxu0 0.0
        %698 = vmatmul.mubr.f32.gmra.mxu0 %v358
        %v699 = vpop.f32.mrf.mxu0
        %v700 = vadd.f32 0.0, %v699
        %v701 = vpop.f32.mrf.mxu0
        %v702 = vadd.f32 0.0, %v701
        %703 = vmatprep.mubr.f32.mxu0 0.0
        %704 = vmatmul.mubr.f32.gmra.mxu0 %v361
        %v705 = vpop.f32.mrf.mxu0
        %v706 = vadd.f32 0.0, %v705
        %v707 = vpop.f32.mrf.mxu0
        %v708 = vadd.f32 0.0, %v707
        %709 = vmatprep.mubr.f32.mxu0 0.0
        %710 = vmatmul.mubr.f32.gmra.mxu0 %v364
        %v711 = vpop.f32.mrf.mxu0
        %v712 = vadd.f32 0.0, %v711
        %v713 = vpop.f32.mrf.mxu0
        %v714 = vadd.f32 0.0, %v713
        %715 = vmatprep.mubr.f32.mxu0 0.0
        %716 = vmatmul.mubr.f32.gmra.mxu0 %v367
        %v717 = vpop.f32.mrf.mxu0
        %v718 = vadd.f32 0.0, %v717
        %v719 = vpop.f32.mrf.mxu0
        %v720 = vadd.f32 0.0, %v719
        %721 = vmatprep.mubr.f32.mxu0 0.0
        %722 = vmatmul.mubr.f32.gmra.mxu0 %v370
        %v723 = vpop.f32.mrf.mxu0
        %v724 = vadd.f32 0.0, %v723
        %v725 = vpop.f32.mrf.mxu0
        %v726 = vadd.f32 0.0, %v725
        %727 = vdwg.mxu0
        %728 = vmatprep.subr.mxu0 0.0
        %729 = vmatpush1.msra.mxu0 0.0
        %730 = vmatprep.subr.mxu0 0.0
        %731 = vmatpush1.msra.mxu0 0.0
        %732 = vmatprep.subr.mxu0 0.0
        %733 = vmatpush1.msra.mxu0 0.0
        %734 = vmatprep.subr.mxu0 0.0
        %735 = vmatpush1.msra.mxu0 0.0
        %736 = vmatprep.subr.mxu0 0.0
        %737 = vmatpush1.msra.mxu0 0.0
        %738 = vmatprep.subr.mxu0 0.0
        %739 = vmatpush1.msra.mxu0 0.0
        %740 = vmatprep.subr.mxu0 0.0
        %741 = vmatpush1.msra.mxu0 0.0
        %742 = vmatprep.subr.mxu0 0.0
        %743 = vmatpush1.msra.mxu0 0.0
        %744 = vmatprep.subr.mxu0 0.0
        %745 = vmatpush1.msra.mxu0 0.0
        %746 = vmatprep.subr.mxu0 0.0
        %747 = vmatpush1.msra.mxu0 0.0
        %748 = vmatprep.subr.mxu0 0.0
        %749 = vmatpush1.msra.mxu0 0.0
        %750 = vmatprep.subr.mxu0 0.0
        %751 = vmatpush1.msra.mxu0 0.0
        %752 = vmatprep.subr.mxu0 0.0
        %753 = vmatpush1.msra.mxu0 0.0
        %754 = vmatprep.subr.mxu0 0.0
        %755 = vmatpush1.msra.mxu0 0.0
        %756 = vmatprep.subr.mxu0 0.0
        %757 = vmatpush1.msra.mxu0 0.0
        %758 = vmatprep.subr.mxu0 %v387
        %759 = vmatpush1.msra.mxu0 %v385
        %760 = vmatprep.subr.mxu0 0.0
        %761 = vmatpush2.msra.mxu0 0.0
        %762 = vmatprep.subr.mxu0 0.0
        %763 = vmatpush2.msra.mxu0 0.0
        %764 = vmatprep.subr.mxu0 0.0
        %765 = vmatpush2.msra.mxu0 0.0
        %766 = vmatprep.subr.mxu0 0.0
        %767 = vmatpush2.msra.mxu0 0.0
        %768 = vmatprep.subr.mxu0 0.0
        %769 = vmatpush2.msra.mxu0 0.0
        %770 = vmatprep.subr.mxu0 0.0
        %771 = vmatpush2.msra.mxu0 0.0
        %772 = vmatprep.subr.mxu0 0.0
        %773 = vmatpush2.msra.mxu0 0.0
        %774 = vmatprep.subr.mxu0 0.0
        %775 = vmatpush2.msra.mxu0 0.0
        %776 = vmatprep.subr.mxu0 0.0
        %777 = vmatpush2.msra.mxu0 0.0
        %778 = vmatprep.subr.mxu0 0.0
        %779 = vmatpush2.msra.mxu0 0.0
        %780 = vmatprep.subr.mxu0 0.0
        %781 = vmatpush2.msra.mxu0 0.0
        %782 = vmatprep.subr.mxu0 0.0
        %783 = vmatpush2.msra.mxu0 0.0
        %784 = vmatprep.subr.mxu0 0.0
        %785 = vmatpush2.msra.mxu0 0.0
        %786 = vmatprep.subr.mxu0 0.0
        %787 = vmatpush2.msra.mxu0 0.0
        %788 = vmatprep.subr.mxu0 0.0
        %789 = vmatpush2.msra.mxu0 0.0
        %790 = vmatprep.subr.mxu0 0.0
        %791 = vmatpush2.msra.mxu0 0.0
        %792 = vmatprep.mubr.f32.mxu0 0.0
        %793 = vmatmul.mubr.f32.gmra.mxu0 %v349
        %v794 = vpop.f32.mrf.mxu0
        %v795 = vadd.f32 0.0, %v794
        %v796 = vpop.f32.mrf.mxu0
        %v797 = vadd.f32 0.0, %v796
        %798 = vmatprep.mubr.f32.mxu0 0.0
        %799 = vmatmul.mubr.f32.gmra.mxu0 %v352
        %v800 = vpop.f32.mrf.mxu0
        %v801 = vadd.f32 0.0, %v800
        %v802 = vpop.f32.mrf.mxu0
        %v803 = vadd.f32 0.0, %v802
        %804 = vmatprep.mubr.f32.mxu0 0.0
        %805 = vmatmul.mubr.f32.gmra.mxu0 %v355
        %v806 = vpop.f32.mrf.mxu0
        %v807 = vadd.f32 0.0, %v806
        %v808 = vpop.f32.mrf.mxu0
        %v809 = vadd.f32 0.0, %v808
        %810 = vmatprep.mubr.f32.mxu0 0.0
        %811 = vmatmul.mubr.f32.gmra.mxu0 %v358
        %v812 = vpop.f32.mrf.mxu0
        %v813 = vadd.f32 0.0, %v812
        %v814 = vpop.f32.mrf.mxu0
        %v815 = vadd.f32 0.0, %v814
        %816 = vmatprep.mubr.f32.mxu0 0.0
        %817 = vmatmul.mubr.f32.gmra.mxu0 %v361
        %v818 = vpop.f32.mrf.mxu0
        %v819 = vadd.f32 0.0, %v818
        %v820 = vpop.f32.mrf.mxu0
        %v821 = vadd.f32 0.0, %v820
        %822 = vmatprep.mubr.f32.mxu0 0.0
        %823 = vmatmul.mubr.f32.gmra.mxu0 %v364
        %v824 = vpop.f32.mrf.mxu0
        %v825 = vadd.f32 0.0, %v824
        %v826 = vpop.f32.mrf.mxu0
        %v827 = vadd.f32 0.0, %v826
        %828 = vmatprep.mubr.f32.mxu0 0.0
        %829 = vmatmul.mubr.f32.gmra.mxu0 %v367
        %v830 = vpop.f32.mrf.mxu0
        %v831 = vadd.f32 0.0, %v830
        %v832 = vpop.f32.mrf.mxu0
        %v833 = vadd.f32 0.0, %v832
        %834 = vmatprep.mubr.f32.mxu0 0.0
        %835 = vmatmul.mubr.f32.gmra.mxu0 %v370
        %v836 = vpop.f32.mrf.mxu0
        %v837 = vadd.f32 0.0, %v836
        %v838 = vpop.f32.mrf.mxu0
        %v839 = vadd.f32 0.0, %v838
        %840 = vdwg.mxu0
        %v849 = vunpack.c.l.b16 %v271
        %v850 = vunpack.c.l.b16 %v272
        %v851 = vunpack.c.l.b16 %v273
        %v852 = vunpack.c.l.b16 %v274
        %v853 = vunpack.c.l.b16 %v275
        %v854 = vunpack.c.l.b16 %v276
        %v855 = vunpack.c.l.b16 %v277
        %v856 = vunpack.c.l.b16 %v278
        %v857 = vpack.c.b16 %v850, %v849
        %v858 = vpack.c.b16 %v852, %v851
        %v859 = vpack.c.b16 %v854, %v853
        %v860 = vpack.c.b16 %v856, %v855
        %v909 = vunpack.c.l.b16 %v279
        %v910 = vunpack.c.h.b16 %v279
        %v911 = vunpack.c.l.b16 %v280
        %v912 = vunpack.c.h.b16 %v280
        %v913 = vunpack.c.l.b16 %v281
        %v914 = vunpack.c.h.b16 %v281
        %v915 = vunpack.c.l.b16 %v282
        %v916 = vunpack.c.h.b16 %v282
        %v917 = vunpack.c.l.b16 %v283
        %v918 = vunpack.c.h.b16 %v283
        %v919 = vunpack.c.l.b16 %v284
        %v920 = vunpack.c.h.b16 %v284
        %v921 = vunpack.c.l.b16 %v285
        %v922 = vunpack.c.h.b16 %v285
        %v923 = vunpack.c.l.b16 %v286
        %v924 = vunpack.c.h.b16 %v286
        %v925 = vunpack.c.l.b16 %v287
        %v926 = vunpack.c.h.b16 %v287
        %v927 = vunpack.c.l.b16 %v288
        %v928 = vunpack.c.h.b16 %v288
        %v929 = vunpack.c.l.b16 %v289
        %v930 = vunpack.c.h.b16 %v289
        %v931 = vunpack.c.l.b16 %v290
        %v932 = vunpack.c.h.b16 %v290
        %v933 = vunpack.c.l.b16 %v291
        %v934 = vunpack.c.h.b16 %v291
        %v935 = vunpack.c.l.b16 %v292
        %v936 = vunpack.c.h.b16 %v292
        %v937 = vunpack.c.l.b16 %v293
        %v938 = vunpack.c.h.b16 %v293
        %v939 = vunpack.c.l.b16 %v294
        %v940 = vunpack.c.h.b16 %v294
        %v941 = vunpack.c.l.b16 %v295
        %v942 = vunpack.c.h.b16 %v295
        %v943 = vunpack.c.l.b16 %v296
        %v944 = vunpack.c.h.b16 %v296
        %v945 = vunpack.c.l.b16 %v297
        %v946 = vunpack.c.h.b16 %v297
        %v947 = vunpack.c.l.b16 %v298
        %v948 = vunpack.c.h.b16 %v298
        %v949 = vunpack.c.l.b16 %v299
        %v950 = vunpack.c.h.b16 %v299
        %v951 = vunpack.c.l.b16 %v300
        %v952 = vunpack.c.h.b16 %v300
        %v953 = vunpack.c.l.b16 %v301
        %v954 = vunpack.c.h.b16 %v301
        %v955 = vunpack.c.l.b16 %v302
        %v956 = vunpack.c.h.b16 %v302
        %v957 = vunpack.c.l.b16 %v303
        %v958 = vunpack.c.h.b16 %v303
        %v959 = vunpack.c.l.b16 %v304
        %v960 = vunpack.c.h.b16 %v304
        %v961 = vunpack.c.l.b16 %v305
        %v962 = vunpack.c.h.b16 %v305
        %v963 = vunpack.c.l.b16 %v306
        %v964 = vunpack.c.h.b16 %v306
        %v965 = vunpack.c.l.b16 %v307
        %v966 = vunpack.c.h.b16 %v307
        %v967 = vunpack.c.l.b16 %v308
        %v968 = vunpack.c.h.b16 %v308
        %v969 = vunpack.c.l.b16 %v309
        %v970 = vunpack.c.h.b16 %v309
        %v971 = vunpack.c.l.b16 %v310
        %v972 = vunpack.c.h.b16 %v310
        %v973 = vunpack.c.l.b16 %v311
        %v974 = vunpack.c.h.b16 %v311
        %v975 = vunpack.c.l.b16 %v312
        %v976 = vunpack.c.h.b16 %v312
        %v977 = vunpack.c.l.b16 %v313
        %v978 = vunpack.c.h.b16 %v313
        %v979 = vunpack.c.l.b16 %v314
        %v980 = vunpack.c.h.b16 %v314
        %v981 = vunpack.c.l.b16 %v315
        %v982 = vunpack.c.h.b16 %v315
        %v983 = vunpack.c.l.b16 %v316
        %v984 = vunpack.c.h.b16 %v316
        %v985 = vunpack.c.l.b16 %v317
        %v986 = vunpack.c.h.b16 %v317
        %v987 = vunpack.c.l.b16 %v318
        %v988 = vunpack.c.h.b16 %v318
        %v989 = vunpack.c.l.b16 %v319
        %v990 = vunpack.c.h.b16 %v319
        %v991 = vunpack.c.l.b16 %v320
        %v992 = vunpack.c.h.b16 %v320
        %v993 = vunpack.c.l.b16 %v321
        %v994 = vunpack.c.h.b16 %v321
        %v995 = vunpack.c.l.b16 %v322
        %v996 = vunpack.c.h.b16 %v322
        %v997 = vunpack.c.l.b16 %v323
        %v998 = vunpack.c.h.b16 %v323
        %v999 = vunpack.c.l.b16 %v324
        %v1000 = vunpack.c.h.b16 %v324
        %v1001 = vunpack.c.l.b16 %v325
        %v1002 = vunpack.c.h.b16 %v325
        %v1003 = vunpack.c.l.b16 %v326
        %v1004 = vunpack.c.h.b16 %v326
        %v1005 = vpack.c.b16 %v917, %v909
        %v1006 = vpack.c.b16 %v918, %v910
        %v1007 = vpack.c.b16 %v919, %v911
        %v1008 = vpack.c.b16 %v920, %v912
        %v1009 = vpack.c.b16 %v921, %v913
        %v1010 = vpack.c.b16 %v922, %v914
        %v1011 = vpack.c.b16 %v923, %v915
        %v1012 = vpack.c.b16 %v924, %v916
        %v1013 = vpack.c.b16 %v933, %v925
        %v1014 = vpack.c.b16 %v934, %v926
        %v1015 = vpack.c.b16 %v935, %v927
        %v1016 = vpack.c.b16 %v936, %v928
        %v1017 = vpack.c.b16 %v937, %v929
        %v1018 = vpack.c.b16 %v938, %v930
        %v1019 = vpack.c.b16 %v939, %v931
        %v1020 = vpack.c.b16 %v940, %v932
        %v1021 = vpack.c.b16 %v949, %v941
        %v1022 = vpack.c.b16 %v950, %v942
        %v1023 = vpack.c.b16 %v951, %v943
        %v1024 = vpack.c.b16 %v952, %v944
        %v1025 = vpack.c.b16 %v953, %v945
        %v1026 = vpack.c.b16 %v954, %v946
        %v1027 = vpack.c.b16 %v955, %v947
        %v1028 = vpack.c.b16 %v956, %v948
        %v1029 = vpack.c.b16 %v965, %v957
        %v1030 = vpack.c.b16 %v966, %v958
        %v1031 = vpack.c.b16 %v967, %v959
        %v1032 = vpack.c.b16 %v968, %v960
        %v1033 = vpack.c.b16 %v969, %v961
        %v1034 = vpack.c.b16 %v970, %v962
        %v1035 = vpack.c.b16 %v971, %v963
        %v1036 = vpack.c.b16 %v972, %v964
        %v1037 = vpack.c.b16 %v981, %v973
        %v1038 = vpack.c.b16 %v982, %v974
        %v1039 = vpack.c.b16 %v983, %v975
        %v1040 = vpack.c.b16 %v984, %v976
        %v1041 = vpack.c.b16 %v985, %v977
        %v1042 = vpack.c.b16 %v986, %v978
        %v1043 = vpack.c.b16 %v987, %v979
        %v1044 = vpack.c.b16 %v988, %v980
        %v1045 = vpack.c.b16 %v997, %v989
        %v1046 = vpack.c.b16 %v998, %v990
        %v1047 = vpack.c.b16 %v999, %v991
        %v1048 = vpack.c.b16 %v1000, %v992
        %v1049 = vpack.c.b16 %v1001, %v993
        %v1050 = vpack.c.b16 %v1002, %v994
        %v1051 = vpack.c.b16 %v1003, %v995
        %v1052 = vpack.c.b16 %v1004, %v996
        %vm1101 = vcmask 785408
        %v1103 = vsel %vm1101, %v857, 0
        %v1106 = vsel %vm1101, %v858, 0
        %v1109 = vsel %vm1101, %v859, 0
        %v1112 = vsel %vm1101, %v860, 0
        %1114 = vmatprep.subr.bf16.mxu0 0
        %1115 = vmatpush1.bf16.msra.mxu0 0
        %1116 = vmatprep.subr.bf16.mxu0 0
        %1117 = vmatpush1.bf16.msra.mxu0 0
        %1118 = vmatprep.subr.bf16.mxu0 %v1046
        %1119 = vmatpush1.bf16.msra.mxu0 %v1045
        %1120 = vmatprep.subr.bf16.mxu0 %v1038
        %1121 = vmatpush1.bf16.msra.mxu0 %v1037
        %1122 = vmatprep.subr.bf16.mxu0 %v1030
        %1123 = vmatpush1.bf16.msra.mxu0 %v1029
        %1124 = vmatprep.subr.bf16.mxu0 %v1022
        %1125 = vmatpush1.bf16.msra.mxu0 %v1021
        %1126 = vmatprep.subr.bf16.mxu0 %v1014
        %1127 = vmatpush1.bf16.msra.mxu0 %v1013
        %1128 = vmatprep.subr.bf16.mxu0 %v1006
        %1129 = vmatpush1.bf16.msra.mxu0 %v1005
        %1130 = vmatprep.subr.bf16.mxu0 0
        %1131 = vmatpush2.bf16.msra.mxu0 0
        %1132 = vmatprep.subr.bf16.mxu0 0
        %1133 = vmatpush2.bf16.msra.mxu0 0
        %1134 = vmatprep.subr.bf16.mxu0 0
        %1135 = vmatpush2.bf16.msra.mxu0 0
        %1136 = vmatprep.subr.bf16.mxu0 0
        %1137 = vmatpush2.bf16.msra.mxu0 0
        %1138 = vmatprep.subr.bf16.mxu0 0
        %1139 = vmatpush2.bf16.msra.mxu0 0
        %1140 = vmatprep.subr.bf16.mxu0 0
        %1141 = vmatpush2.bf16.msra.mxu0 0
        %1142 = vmatprep.subr.bf16.mxu0 0
        %1143 = vmatpush2.bf16.msra.mxu0 0
        %1144 = vmatprep.subr.bf16.mxu0 0
        %1145 = vmatpush2.bf16.msra.mxu0 0
        %1146 = vmatprep.mubr.bf16.mxu0 0
        %1147 = vmatmul.mubr.bf16.gmra.mxu0 %v1103
        %v1148 = vpop.f32.mrf.mxu0
        %v1149 = vadd.f32 %v456, %v1148
        %v1150 = vpop.f32.mrf.mxu0
        %v1151 = vadd.f32 %v458, %v1150
        %v1152 = vpop.f32.mrf.mxu0
        %v1153 = vadd.f32 %v462, %v1152
        %v1154 = vpop.f32.mrf.mxu0
        %v1155 = vadd.f32 %v464, %v1154
        %1156 = vmatprep.mubr.bf16.mxu0 0
        %1157 = vmatmul.mubr.bf16.gmra.mxu0 %v1106
        %v1158 = vpop.f32.mrf.mxu0
        %v1159 = vadd.f32 %v468, %v1158
        %v1160 = vpop.f32.mrf.mxu0
        %v1161 = vadd.f32 %v470, %v1160
        %v1162 = vpop.f32.mrf.mxu0
        %v1163 = vadd.f32 %v474, %v1162
        %v1164 = vpop.f32.mrf.mxu0
        %v1165 = vadd.f32 %v476, %v1164
        %1166 = vmatprep.mubr.bf16.mxu0 0
        %1167 = vmatmul.mubr.bf16.gmra.mxu0 %v1109
        %v1168 = vpop.f32.mrf.mxu0
        %v1169 = vadd.f32 %v480, %v1168
        %v1170 = vpop.f32.mrf.mxu0
        %v1171 = vadd.f32 %v482, %v1170
        %v1172 = vpop.f32.mrf.mxu0
        %v1173 = vadd.f32 %v486, %v1172
        %v1174 = vpop.f32.mrf.mxu0
        %v1175 = vadd.f32 %v488, %v1174
        %1176 = vmatprep.mubr.bf16.mxu0 0
        %1177 = vmatmul.mubr.bf16.gmra.mxu0 %v1112
        %v1178 = vpop.f32.mrf.mxu0
        %v1179 = vadd.f32 %v492, %v1178
        %v1180 = vpop.f32.mrf.mxu0
        %v1181 = vadd.f32 %v494, %v1180
        %v1182 = vpop.f32.mrf.mxu0
        %v1183 = vadd.f32 %v498, %v1182
        %v1184 = vpop.f32.mrf.mxu0
        %v1185 = vadd.f32 %v500, %v1184
        %1186 = vdwg.mxu0
        %1187 = vmatprep.subr.bf16.mxu0 0
        %1188 = vmatpush1.bf16.msra.mxu0 0
        %1189 = vmatprep.subr.bf16.mxu0 0
        %1190 = vmatpush1.bf16.msra.mxu0 0
        %1191 = vmatprep.subr.bf16.mxu0 %v1048
        %1192 = vmatpush1.bf16.msra.mxu0 %v1047
        %1193 = vmatprep.subr.bf16.mxu0 %v1040
        %1194 = vmatpush1.bf16.msra.mxu0 %v1039
        %1195 = vmatprep.subr.bf16.mxu0 %v1032
        %1196 = vmatpush1.bf16.msra.mxu0 %v1031
        %1197 = vmatprep.subr.bf16.mxu0 %v1024
        %1198 = vmatpush1.bf16.msra.mxu0 %v1023
        %1199 = vmatprep.subr.bf16.mxu0 %v1016
        %1200 = vmatpush1.bf16.msra.mxu0 %v1015
        %1201 = vmatprep.subr.bf16.mxu0 %v1008
        %1202 = vmatpush1.bf16.msra.mxu0 %v1007
        %1203 = vmatprep.subr.bf16.mxu0 0
        %1204 = vmatpush2.bf16.msra.mxu0 0
        %1205 = vmatprep.subr.bf16.mxu0 0
        %1206 = vmatpush2.bf16.msra.mxu0 0
        %1207 = vmatprep.subr.bf16.mxu0 0
        %1208 = vmatpush2.bf16.msra.mxu0 0
        %1209 = vmatprep.subr.bf16.mxu0 0
        %1210 = vmatpush2.bf16.msra.mxu0 0
        %1211 = vmatprep.subr.bf16.mxu0 0
        %1212 = vmatpush2.bf16.msra.mxu0 0
        %1213 = vmatprep.subr.bf16.mxu0 0
        %1214 = vmatpush2.bf16.msra.mxu0 0
        %1215 = vmatprep.subr.bf16.mxu0 0
        %1216 = vmatpush2.bf16.msra.mxu0 0
        %1217 = vmatprep.subr.bf16.mxu0 0
        %1218 = vmatpush2.bf16.msra.mxu0 0
        %1219 = vmatprep.mubr.bf16.mxu0 0
        %1220 = vmatmul.mubr.bf16.gmra.mxu0 %v1103
        %v1221 = vpop.f32.mrf.mxu0
        %v1222 = vadd.f32 %v569, %v1221
        %v1223 = vpop.f32.mrf.mxu0
        %v1224 = vadd.f32 %v571, %v1223
        %v1225 = vpop.f32.mrf.mxu0
        %v1226 = vadd.f32 %v575, %v1225
        %v1227 = vpop.f32.mrf.mxu0
        %v1228 = vadd.f32 %v577, %v1227
        %1229 = vmatprep.mubr.bf16.mxu0 0
        %1230 = vmatmul.mubr.bf16.gmra.mxu0 %v1106
        %v1231 = vpop.f32.mrf.mxu0
        %v1232 = vadd.f32 %v581, %v1231
        %v1233 = vpop.f32.mrf.mxu0
        %v1234 = vadd.f32 %v583, %v1233
        %v1235 = vpop.f32.mrf.mxu0
        %v1236 = vadd.f32 %v587, %v1235
        %v1237 = vpop.f32.mrf.mxu0
        %v1238 = vadd.f32 %v589, %v1237
        %1239 = vmatprep.mubr.bf16.mxu0 0
        %1240 = vmatmul.mubr.bf16.gmra.mxu0 %v1109
        %v1241 = vpop.f32.mrf.mxu0
        %v1242 = vadd.f32 %v593, %v1241
        %v1243 = vpop.f32.mrf.mxu0
        %v1244 = vadd.f32 %v595, %v1243
        %v1245 = vpop.f32.mrf.mxu0
        %v1246 = vadd.f32 %v599, %v1245
        %v1247 = vpop.f32.mrf.mxu0
        %v1248 = vadd.f32 %v601, %v1247
        %1249 = vmatprep.mubr.bf16.mxu0 0
        %1250 = vmatmul.mubr.bf16.gmra.mxu0 %v1112
        %v1251 = vpop.f32.mrf.mxu0
        %v1252 = vadd.f32 %v605, %v1251
        %v1253 = vpop.f32.mrf.mxu0
        %v1254 = vadd.f32 %v607, %v1253
        %v1255 = vpop.f32.mrf.mxu0
        %v1256 = vadd.f32 %v611, %v1255
        %v1257 = vpop.f32.mrf.mxu0
        %v1258 = vadd.f32 %v613, %v1257
        %1259 = vdwg.mxu0
        %1260 = vmatprep.subr.bf16.mxu0 0
        %1261 = vmatpush1.bf16.msra.mxu0 0
        %1262 = vmatprep.subr.bf16.mxu0 0
        %1263 = vmatpush1.bf16.msra.mxu0 0
        %1264 = vmatprep.subr.bf16.mxu0 %v1050
        %1265 = vmatpush1.bf16.msra.mxu0 %v1049
        %1266 = vmatprep.subr.bf16.mxu0 %v1042
        %1267 = vmatpush1.bf16.msra.mxu0 %v1041
        %1268 = vmatprep.subr.bf16.mxu0 %v1034
        %1269 = vmatpush1.bf16.msra.mxu0 %v1033
        %1270 = vmatprep.subr.bf16.mxu0 %v1026
        %1271 = vmatpush1.bf16.msra.mxu0 %v1025
        %1272 = vmatprep.subr.bf16.mxu0 %v1018
        %1273 = vmatpush1.bf16.msra.mxu0 %v1017
        %1274 = vmatprep.subr.bf16.mxu0 %v1010
        %1275 = vmatpush1.bf16.msra.mxu0 %v1009
        %1276 = vmatprep.subr.bf16.mxu0 0
        %1277 = vmatpush2.bf16.msra.mxu0 0
        %1278 = vmatprep.subr.bf16.mxu0 0
        %1279 = vmatpush2.bf16.msra.mxu0 0
        %1280 = vmatprep.subr.bf16.mxu0 0
        %1281 = vmatpush2.bf16.msra.mxu0 0
        %1282 = vmatprep.subr.bf16.mxu0 0
        %1283 = vmatpush2.bf16.msra.mxu0 0
        %1284 = vmatprep.subr.bf16.mxu0 0
        %1285 = vmatpush2.bf16.msra.mxu0 0
        %1286 = vmatprep.subr.bf16.mxu0 0
        %1287 = vmatpush2.bf16.msra.mxu0 0
        %1288 = vmatprep.subr.bf16.mxu0 0
        %1289 = vmatpush2.bf16.msra.mxu0 0
        %1290 = vmatprep.subr.bf16.mxu0 0
        %1291 = vmatpush2.bf16.msra.mxu0 0
        %1292 = vmatprep.mubr.bf16.mxu0 0
        %1293 = vmatmul.mubr.bf16.gmra.mxu0 %v1103
        %v1294 = vpop.f32.mrf.mxu0
        %v1295 = vadd.f32 %v682, %v1294
        %v1296 = vpop.f32.mrf.mxu0
        %v1297 = vadd.f32 %v684, %v1296
        %v1298 = vpop.f32.mrf.mxu0
        %v1299 = vadd.f32 %v688, %v1298
        %v1300 = vpop.f32.mrf.mxu0
        %v1301 = vadd.f32 %v690, %v1300
        %1302 = vmatprep.mubr.bf16.mxu0 0
        %1303 = vmatmul.mubr.bf16.gmra.mxu0 %v1106
        %v1304 = vpop.f32.mrf.mxu0
        %v1305 = vadd.f32 %v694, %v1304
        %v1306 = vpop.f32.mrf.mxu0
        %v1307 = vadd.f32 %v696, %v1306
        %v1308 = vpop.f32.mrf.mxu0
        %v1309 = vadd.f32 %v700, %v1308
        %v1310 = vpop.f32.mrf.mxu0
        %v1311 = vadd.f32 %v702, %v1310
        %1312 = vmatprep.mubr.bf16.mxu0 0
        %1313 = vmatmul.mubr.bf16.gmra.mxu0 %v1109
        %v1314 = vpop.f32.mrf.mxu0
        %v1315 = vadd.f32 %v706, %v1314
        %v1316 = vpop.f32.mrf.mxu0
        %v1317 = vadd.f32 %v708, %v1316
        %v1318 = vpop.f32.mrf.mxu0
        %v1319 = vadd.f32 %v712, %v1318
        %v1320 = vpop.f32.mrf.mxu0
        %v1321 = vadd.f32 %v714, %v1320
        %1322 = vmatprep.mubr.bf16.mxu0 0
        %1323 = vmatmul.mubr.bf16.gmra.mxu0 %v1112
        %v1324 = vpop.f32.mrf.mxu0
        %v1325 = vadd.f32 %v718, %v1324
        %v1326 = vpop.f32.mrf.mxu0
        %v1327 = vadd.f32 %v720, %v1326
        %v1328 = vpop.f32.mrf.mxu0
        %v1329 = vadd.f32 %v724, %v1328
        %v1330 = vpop.f32.mrf.mxu0
        %v1331 = vadd.f32 %v726, %v1330
        %1332 = vdwg.mxu0
        %1333 = vmatprep.subr.bf16.mxu0 0
        %1334 = vmatpush1.bf16.msra.mxu0 0
        %1335 = vmatprep.subr.bf16.mxu0 0
        %1336 = vmatpush1.bf16.msra.mxu0 0
        %1337 = vmatprep.subr.bf16.mxu0 %v1052
        %1338 = vmatpush1.bf16.msra.mxu0 %v1051
        %1339 = vmatprep.subr.bf16.mxu0 %v1044
        %1340 = vmatpush1.bf16.msra.mxu0 %v1043
        %1341 = vmatprep.subr.bf16.mxu0 %v1036
        %1342 = vmatpush1.bf16.msra.mxu0 %v1035
        %1343 = vmatprep.subr.bf16.mxu0 %v1028
        %1344 = vmatpush1.bf16.msra.mxu0 %v1027
        %1345 = vmatprep.subr.bf16.mxu0 %v1020
        %1346 = vmatpush1.bf16.msra.mxu0 %v1019
        %1347 = vmatprep.subr.bf16.mxu0 %v1012
        %1348 = vmatpush1.bf16.msra.mxu0 %v1011
        %1349 = vmatprep.subr.bf16.mxu0 0
        %1350 = vmatpush2.bf16.msra.mxu0 0
        %1351 = vmatprep.subr.bf16.mxu0 0
        %1352 = vmatpush2.bf16.msra.mxu0 0
        %1353 = vmatprep.subr.bf16.mxu0 0
        %1354 = vmatpush2.bf16.msra.mxu0 0
        %1355 = vmatprep.subr.bf16.mxu0 0
        %1356 = vmatpush2.bf16.msra.mxu0 0
        %1357 = vmatprep.subr.bf16.mxu0 0
        %1358 = vmatpush2.bf16.msra.mxu0 0
        %1359 = vmatprep.subr.bf16.mxu0 0
        %1360 = vmatpush2.bf16.msra.mxu0 0
        %1361 = vmatprep.subr.bf16.mxu0 0
        %1362 = vmatpush2.bf16.msra.mxu0 0
        %1363 = vmatprep.subr.bf16.mxu0 0
        %1364 = vmatpush2.bf16.msra.mxu0 0
        %1365 = vmatprep.mubr.bf16.mxu0 0
        %1366 = vmatmul.mubr.bf16.gmra.mxu0 %v1103
        %v1367 = vpop.f32.mrf.mxu0
        %v1368 = vadd.f32 %v795, %v1367
        %v1369 = vpop.f32.mrf.mxu0
        %v1370 = vadd.f32 %v797, %v1369
        %v1371 = vpop.f32.mrf.mxu0
        %v1372 = vadd.f32 %v801, %v1371
        %v1373 = vpop.f32.mrf.mxu0
        %v1374 = vadd.f32 %v803, %v1373
        %1375 = vmatprep.mubr.bf16.mxu0 0
        %1376 = vmatmul.mubr.bf16.gmra.mxu0 %v1106
        %v1377 = vpop.f32.mrf.mxu0
        %v1378 = vadd.f32 %v807, %v1377
        %v1379 = vpop.f32.mrf.mxu0
        %v1380 = vadd.f32 %v809, %v1379
        %v1381 = vpop.f32.mrf.mxu0
        %v1382 = vadd.f32 %v813, %v1381
        %v1383 = vpop.f32.mrf.mxu0
        %v1384 = vadd.f32 %v815, %v1383
        %1385 = vmatprep.mubr.bf16.mxu0 0
        %1386 = vmatmul.mubr.bf16.gmra.mxu0 %v1109
        %v1387 = vpop.f32.mrf.mxu0
        %v1388 = vadd.f32 %v819, %v1387
        %v1389 = vpop.f32.mrf.mxu0
        %v1390 = vadd.f32 %v821, %v1389
        %v1391 = vpop.f32.mrf.mxu0
        %v1392 = vadd.f32 %v825, %v1391
        %v1393 = vpop.f32.mrf.mxu0
        %v1394 = vadd.f32 %v827, %v1393
        %1395 = vmatprep.mubr.bf16.mxu0 0
        %1396 = vmatmul.mubr.bf16.gmra.mxu0 %v1112
        %v1397 = vpop.f32.mrf.mxu0
        %v1398 = vadd.f32 %v831, %v1397
        %v1399 = vpop.f32.mrf.mxu0
        %v1400 = vadd.f32 %v833, %v1399
        %v1401 = vpop.f32.mrf.mxu0
        %v1402 = vadd.f32 %v837, %v1401
        %v1403 = vpop.f32.mrf.mxu0
        %v1404 = vadd.f32 %v839, %v1403
        %1405 = vdwg.mxu0
        %1406 = vst [vmem:[%s258] sm:$0xff] %v1149
        %1407 = vst [vmem:[%s258 + $0x8] sm:$0xff] %v1151
        %1408 = vst [vmem:[%s258 + $0x10] sm:$0xff] %v1222
        %1409 = vst [vmem:[%s258 + $0x18] sm:$0xff] %v1224
        %1410 = vst [vmem:[%s258 + $0x20] sm:$0xff] %v1295
        %1411 = vst [vmem:[%s258 + $0x28] sm:$0xff] %v1297
        %1412 = vst [vmem:[%s258 + $0x30] sm:$0xff] %v1368
        %1413 = vst [vmem:[%s258 + $0x38] sm:$0xff] %v1370
        %1414 = vst [vmem:[%s258 + $0x40] sm:$0xff] %v1153
        %1415 = vst [vmem:[%s258 + $0x48] sm:$0xff] %v1155
        %1416 = vst [vmem:[%s258 + $0x50] sm:$0xff] %v1226
        %1417 = vst [vmem:[%s258 + $0x58] sm:$0xff] %v1228
        %1418 = vst [vmem:[%s258 + $0x60] sm:$0xff] %v1299
        %1419 = vst [vmem:[%s258 + $0x68] sm:$0xff] %v1301
        %1420 = vst [vmem:[%s258 + $0x70] sm:$0xff] %v1372
        %1421 = vst [vmem:[%s258 + $0x78] sm:$0xff] %v1374
        %1422 = vst [vmem:[%s258 + $0x80] sm:$0xff] %v1159
        %1423 = vst [vmem:[%s258 + $0x88] sm:$0xff] %v1161
        %1424 = vst [vmem:[%s258 + $0x90] sm:$0xff] %v1232
        %1425 = vst [vmem:[%s258 + $0x98] sm:$0xff] %v1234
        %1426 = vst [vmem:[%s258 + $0xa0] sm:$0xff] %v1305
        %1427 = vst [vmem:[%s258 + $0xa8] sm:$0xff] %v1307
        %1428 = vst [vmem:[%s258 + $0xb0] sm:$0xff] %v1378
        %1429 = vst [vmem:[%s258 + $0xb8] sm:$0xff] %v1380
        %1430 = vst [vmem:[%s258 + $0xc0] sm:$0xff] %v1163
        %1431 = vst [vmem:[%s258 + $0xc8] sm:$0xff] %v1165
        %1432 = vst [vmem:[%s258 + $0xd0] sm:$0xff] %v1236
        %1433 = vst [vmem:[%s258 + $0xd8] sm:$0xff] %v1238
        %1434 = vst [vmem:[%s258 + $0xe0] sm:$0xff] %v1309
        %1435 = vst [vmem:[%s258 + $0xe8] sm:$0xff] %v1311
        %1436 = vst [vmem:[%s258 + $0xf0] sm:$0xff] %v1382
        %1437 = vst [vmem:[%s258 + $0xf8] sm:$0xff] %v1384
        %1438 = vst [vmem:[%s258 + $0x100] sm:$0xff] %v1169
        %1439 = vst [vmem:[%s258 + $0x108] sm:$0xff] %v1171
        %1440 = vst [vmem:[%s258 + $0x110] sm:$0xff] %v1242
        %1441 = vst [vmem:[%s258 + $0x118] sm:$0xff] %v1244
        %1442 = vst [vmem:[%s258 + $0x120] sm:$0xff] %v1315
        %1443 = vst [vmem:[%s258 + $0x128] sm:$0xff] %v1317
        %1444 = vst [vmem:[%s258 + $0x130] sm:$0xff] %v1388
        %1445 = vst [vmem:[%s258 + $0x138] sm:$0xff] %v1390
        %1446 = vst [vmem:[%s258 + $0x140] sm:$0xff] %v1173
        %1447 = vst [vmem:[%s258 + $0x148] sm:$0xff] %v1175
        %1448 = vst [vmem:[%s258 + $0x150] sm:$0xff] %v1246
        %1449 = vst [vmem:[%s258 + $0x158] sm:$0xff] %v1248
        %1450 = vst [vmem:[%s258 + $0x160] sm:$0xff] %v1319
        %1451 = vst [vmem:[%s258 + $0x168] sm:$0xff] %v1321
        %1452 = vst [vmem:[%s258 + $0x170] sm:$0xff] %v1392
        %1453 = vst [vmem:[%s258 + $0x178] sm:$0xff] %v1394
        %1454 = vst [vmem:[%s258 + $0x180] sm:$0xff] %v1179
        %1455 = vst [vmem:[%s258 + $0x188] sm:$0xff] %v1181
        %1456 = vst [vmem:[%s258 + $0x190] sm:$0xff] %v1252
        %1457 = vst [vmem:[%s258 + $0x198] sm:$0xff] %v1254
        %1458 = vst [vmem:[%s258 + $0x1a0] sm:$0xff] %v1325
        %1459 = vst [vmem:[%s258 + $0x1a8] sm:$0xff] %v1327
        %1460 = vst [vmem:[%s258 + $0x1b0] sm:$0xff] %v1398
        %1461 = vst [vmem:[%s258 + $0x1b8] sm:$0xff] %v1400
        %1462 = vst [vmem:[%s258 + $0x1c0] sm:$0xff] %v1183
        %1463 = vst [vmem:[%s258 + $0x1c8] sm:$0xff] %v1185
        %1464 = vst [vmem:[%s258 + $0x1d0] sm:$0xff] %v1256
        %1465 = vst [vmem:[%s258 + $0x1d8] sm:$0xff] %v1258
        %1466 = vst [vmem:[%s258 + $0x1e0] sm:$0xff] %v1329
        %1467 = vst [vmem:[%s258 + $0x1e8] sm:$0xff] %v1331
        %1468 = vst [vmem:[%s258 + $0x1f0] sm:$0xff] %v1402
        %1469 = vst [vmem:[%s258 + $0x1f8] sm:$0xff] %v1404
        %s1470 = sand.u32 %s141, 1
        %s1471 = scalar_lea.sflag [#allocation4], %s1470
        %s1472 = sand.u32 %s141, 1
        %s1473 = smul.addr %s1472, 512
        %s1474 = scalar_lea.vmem [#allocation5], %s1473
        // Predicated region
        $region41: #{tpu_custom_call.1} parent=35 // pred_check
          %p1475 = pneg %p151
        $region42: #{tpu_custom_call.1} parent=35 // pred_check_branch
          %1477 = sbr.rel (%p1475) target = $region44
        $region43: #{tpu_custom_call.1} parent=35 // pred_region
          %s1478 = smul.u32 8, %s26
          %s1480 = ssub.s32 8192, 8192
          %1481 = vsyncadd %s1471, %s1480
          %s1482 = smul.addr %s25, 128
          %s1483 = sadd.s32 %s1478, %s1482
          %s1484 = smul.addr %s1483, 128
          %s1485 = scalar_lea.hbm %s4, %s1484
          %s1486 = sshll.u32 %s1474, 4
          %s1487 = int_to_ptr.vmem [resolvable:$true] %s1486
          %1492 = dma.vmem_to_hbm [thread:$0]  %s1487, 8192, %s1485, %s1471, 1024, 2048, 64
        $region44: #{tpu_custom_call.1} parent=35 // pred_fallthru
          _
      $region36: #{tpu_custom_call.1} parent=5 // pred_fallthru
        _
      %p1493 = scmp.le.s32.totalorder 2, %s16
      // Predicated region
      $region45: #{tpu_custom_call.1} parent=5 // pred_check
        %p1494 = pneg %p1493
      $region46: #{tpu_custom_call.1} parent=5 // pred_check_branch
        %1496 = sbr.rel (%p1494) target = $region48
      $region47: #{tpu_custom_call.1} parent=5 // pred_region
        %s1497 = ssub.s32 %s16, 2
        // Predicated region
        $region49: #{tpu_custom_call.1} parent=47 // pred_check
          %p1498 = pneg %p157
        $region50: #{tpu_custom_call.1} parent=47 // pred_check_branch
          %1500 = sbr.rel (%p1498) target = $region52
        $region51: #{tpu_custom_call.1} parent=47 // pred_region
          %s1501 = sand.u32 %s142, 1
          %s1502 = scalar_lea.sflag [#allocation4], %s1501
          %s1503 = sand.u32 %s142, 1
          %s1504 = smul.addr %s1503, 512
          %s1505 = scalar_lea.vmem [#allocation5], %s1504
          %1506 = dma.done %s1502, 8192
        $region52: #{tpu_custom_call.1} parent=47 // pred_fallthru
          _
      $region48: #{tpu_custom_call.1} parent=5 // pred_fallthru
        _
    $region6: #{tpu_custom_call.1} parent=1 // loop_footer
      %s20 = sadd.s32 1, %s16
    $region7: #{tpu_custom_call.1} parent=1 // loop_footer_branch
      %15 = sbr.rel target = $region3
    $region8: #{tpu_custom_call.1} parent=1 // loop_exit
      _
    %1507 = vsyncpa [#allocation3], 1
    %s1508 = scalar_lea.sflag [#allocation3], 1
    %1509 = vsyncpa %s1508, 1
    %1510 = vsyncpa [#allocation4], 1
    %s1511 = scalar_lea.sflag [#allocation4], 1
    %1512 = vsyncpa %s1511, 1

</llo_original>
